<compile_context>
chip_gen: v7x
topology: tpu7x:2x2x1
jax: 0.10.0
libtpu: 0.0.40
codegen_flags: <defaults>
</compile_context>

<pallas_src>
import functools

import jax
import jax.numpy as jnp
from jax.experimental import pallas as pl
from jax.experimental.pallas import tpu as pltpu


def _cdiv(a, b):
    return -(-a // b)


def _round_up(a, b):
    return _cdiv(a, b) * b


def _sublane_multiple(dtype) -> int:
    # Sub-32-bit dtypes pack along sublanes: 8 rows (4B), 16 (2B), 32 (1B).
    return max(8, 32 // jnp.dtype(dtype).itemsize)


def _shift_kernel(x_ref, o_ref, *, val):
    # One full-tile load, one VPU add, one lane-dense full-width store.
    x = x_ref[...]
    if x.dtype != o_ref.dtype:
        x = x.astype(o_ref.dtype)
    o_ref[...] = x + jnp.asarray(val, dtype=o_ref.dtype)


def shift(x, val, *, target_block_bytes=2 << 20, vmem_limit_bytes=None,
          donate_input=False):
    """Pallas TPU implementation of Shift.forward: y = x + val.

    `val` is a static Python scalar (mirrors nn.Module's self.val fixed at
    construction).  Works for any input shape/size.  On v7x you may pass
    target_block_bytes=8<<20 and vmem_limit_bytes=48<<20 for larger tiles.
    """
    orig_shape = x.shape
    in_dtype = x.dtype
    out_dtype = jnp.result_type(x, val)   # PyTorch-like promotion (int + 0.5 -> float)
    n = x.size
    if n == 0:
        return x.astype(out_dtype)

    # ---- lane-dense (rows, lane) view ------------------------------------
    # Fast path: a multiple-of-128 lane that divides n exactly -> no pad copy
    # on the way in and no slice copy on the way out.
    lane = None
    for cand in (1024, 512, 256, 128):
        if n % cand == 0:
            lane = cand
            break
    needs_pad = lane is None
    if needs_pad:
        lane = 128   # minimize pad amount; still one full vreg wide.
    rows = _cdiv(n, lane)

    flat = x.reshape(-1)
    if needs_pad:
        # TODO(synk): ragged sizes (n % 128 != 0) still pay one pad copy and one
        # slice copy; only reachable when the element count is not a multiple of 128.
        flat = jnp.pad(flat, (0, rows * lane - n))
    x2d = flat.reshape(rows, lane)

    # ---- row tiling --------------------------------------------------------
    sublane = max(_sublane_multiple(in_dtype), _sublane_multiple(out_dtype))
    itemsize = max(jnp.dtype(in_dtype).itemsize, jnp.dtype(out_dtype).itemsize)
    budget_rows = max(sublane,
                      (target_block_bytes // (lane * itemsize)) // sublane * sublane)

    if rows <= sublane:
        tile_r = rows  # tiny input: one block equal to the full row dim (allowed).
    else:
        # Cap at ceil(rows/2) (rounded up to the sublane multiple) so the
        # "parallel" grid axis has >= 2 steps and both v7x TCs get work.
        half_r = _round_up(_cdiv(rows, 2), sublane)
        tile_r = max(sublane, min(budget_rows, half_r))

    grid = (pl.cdiv(rows, tile_r),)  # partial last block is masked by Pallas.

    kernel = functools.partial(_shift_kernel, val=val)
    cost = pl.CostEstimate(
        flops=n,
        transcendentals=0,
        bytes_accessed=n * (jnp.dtype(in_dtype).itemsize
                            + jnp.dtype(out_dtype).itemsize),
    )

    aliases = {}
    if donate_input and in_dtype == out_dtype:
        aliases = {0: 0}   # same-shape/same-dtype elementwise: safe to alias.

    out2d = pl.pallas_call(
        kernel,
        out_shape=jax.ShapeDtypeStruct((rows, lane), out_dtype),
        grid_spec=pl.GridSpec(
            grid=grid,
            in_specs=[pl.BlockSpec((tile_r, lane), lambda i: (i, 0))],
            out_specs=pl.BlockSpec((tile_r, lane), lambda i: (i, 0)),
        ),
        compiler_params=pltpu.CompilerParams(
            dimension_semantics=("parallel",),
            vmem_limit_bytes=vmem_limit_bytes,
        ),
        cost_estimate=cost,
        input_output_aliases=aliases,
    )(x2d)

    if needs_pad:
        return out2d.reshape(-1)[:n].reshape(orig_shape)
    return out2d.reshape(orig_shape)


def shift_ref(x, val):
    """Pure-JAX reference mirroring the PyTorch forward exactly."""
    return x + val


if __name__ == "__main__":
    key = jax.random.PRNGKey(0)

    # 1) Module-consistent small input (B, C, H, W) -- fast no-pad path, grid=1.
    x = jax.random.normal(key, (2, 4, 16, 16), dtype=jnp.float32)
    val = 0.5
    out = jax.block_until_ready(shift(x, val))
    ref = shift_ref(x, val)
    assert out.shape == x.shape and out.dtype == ref.dtype
    assert jnp.array_equal(out, ref), "mismatch vs reference (f32 small)"

    # 2) Ragged, odd-sized input (pad fallback path, no divisibility assert).
    x2 = jax.random.normal(jax.random.PRNGKey(1), (3, 5, 7), dtype=jnp.float32)
    out2 = jax.block_until_ready(shift(x2, -1.25))
    assert jnp.array_equal(out2, shift_ref(x2, -1.25)), "mismatch (ragged)"

    # 3) Medium input -> multi-step grid (>=2 steps for megacore), no-pad path.
    x3 = jax.random.normal(jax.random.PRNGKey(2), (8, 256, 256), dtype=jnp.float32)
    out3 = jax.block_until_ready(shift(x3, 2.0))
    assert jnp.array_equal(out3, shift_ref(x3, 2.0)), "mismatch (medium)"

    # 4) bf16 input: exercises the 16-row sublane multiple; result stays bf16.
    x4 = jax.random.normal(jax.random.PRNGKey(3), (4, 8, 32), dtype=jnp.bfloat16)
    out4 = jax.block_until_ready(shift(x4, 0.5))
    ref4 = shift_ref(x4, 0.5)
    assert out4.dtype == ref4.dtype and jnp.array_equal(out4, ref4), "mismatch (bf16)"

    print("KERNEL_OK")
</pallas_src>

<mosaic_0001>
module attributes {stable_mosaic.version = 11 : i64} {
  func.func @_shift_kernel(%arg0: i32, %arg1: memref<2x1024xf32, #tpu.memory_space<vmem>>, %arg2: memref<2x1024xf32, #tpu.memory_space<vmem>>) attributes {dimension_semantics = [#tpu.dimension_semantics<parallel>], iteration_bounds = array<i64: 1>, scalar_prefetch = 0 : i64, scratch_operands = 0 : i64, tpu.core_type = #tpu.core_type<tc>, window_params = [{transform_indices = @transform_0, window_bounds = array<i64: 2, 1024>}, {transform_indices = @transform_1, window_bounds = array<i64: 2, 1024>}]} {
    %c0 = arith.constant 0 : index
    %c0_0 = arith.constant 0 : index
    %0 = vector.load %arg1[%c0, %c0_0] : memref<2x1024xf32, #tpu.memory_space<vmem>>, vector<2x1024xf32>
    %cst = arith.constant 5.000000e-01 : f32
    %1 = vector.broadcast %cst : f32 to vector<2x1024xf32>
    %2 = arith.addf %0, %1 : vector<2x1024xf32>
    %c0_1 = arith.constant 0 : index
    %c0_2 = arith.constant 0 : index
    %3 = vector.load %arg2[%c0_1, %c0_2] : memref<2x1024xf32, #tpu.memory_space<vmem>>, vector<2x1024xf32>
    tpu.vector_store %arg2[%c0_1, %c0_2], %2 {strides = array<i32>} : memref<2x1024xf32, #tpu.memory_space<vmem>>, vector<2x1024xf32>,
    return
  }
  func.func @transform_0(%arg0: i32) -> (i32, i32) {
    %c0_i32 = arith.constant 0 : i32
    %c0_i32_0 = arith.constant 0 : i32
    return %arg0, %c0_i32 : i32, i32
  }
  func.func @transform_1(%arg0: i32) -> (i32, i32) {
    %c0_i32 = arith.constant 0 : i32
    %c0_i32_0 = arith.constant 0 : i32
    return %arg0, %c0_i32 : i32, i32
  }
}

</mosaic_0001>

<llo_original>
// kernel: tpu_custom_call.1
$region0: #{tpu_custom_call.1}
  #allocation0 [shape = 'u32[]', space=smem, size = 0x4, offset = 0x4, fixed_abs, tag = 'smem constant byte address 0x4 - core index']
  #allocation1 [shape = 'u32[144,128]{1,0:T(1,128)}', space=vmem, size = 0x12000, scoped, tag = 'internal scratch']
  %s0 = inlined_call_operand.hbm [shape: f32[2,1024], index: 0, kind: input, shape index: {}]
  %s1 = inlined_call_operand.hbm [shape: f32[2,1024], index: 1, kind: output, shape index: {}]
  %s2 = sld [smem:[#allocation0]]
  $region18: #{tpu_custom_call.1} parent=0
    _
  %s4 = ssub.s32 1, %s2
  %s5 = scalar_select 0, %s4, %s2
  $region1: #{tpu_custom_call.1} parent=0
    #allocation2 [shape = 'u8[8192]{0}', space=vmem, size = 0x2000, scoped, tag = 'input window, operand 0, single buffered']
    #allocation3 [shape = 's32[1]{0}', space=sflag, size = 0x4, scoped, tag = 'scoped memory for tpu_custom_call.1']
    #allocation4 [shape = 's32[1]{0}', space=sflag, size = 0x4, scoped, tag = 'scoped memory for tpu_custom_call.1']
    #allocation5 [shape = 'u8[8192]{0}', space=vmem, size = 0x2000, scoped, tag = 'output window, operand 0, single buffered']
    %6 = vsyncpa [#allocation3], 0
    %7 = vsyncpa [#allocation4], 0
    // Predicated region
    $region2: #{tpu_custom_call.1} parent=1 // pred_check
      _
    $region3: #{tpu_custom_call.1} parent=1 // pred_check_branch
      %9 = sbr.rel (0) target = $region5
    $region4: #{tpu_custom_call.1} parent=1 // pred_region
      %s11 = ssub.s32 256, 256
      %12 = vsyncadd [#allocation3], %s11
      %s14 = sshll.u32 [#allocation2], 4
      %s15 = int_to_ptr.vmem [resolvable:$true] %s14
      %17 = dma.hbm_to_vmem [thread:$0]  %s0, 256, %s15, [#allocation3]
    $region5: #{tpu_custom_call.1} parent=1 // pred_fallthru
      _
    // Predicated region
    $region6: #{tpu_custom_call.1} parent=1 // pred_check
      _
    $region7: #{tpu_custom_call.1} parent=1 // pred_check_branch
      %19 = sbr.rel (0) target = $region9
    $region8: #{tpu_custom_call.1} parent=1 // pred_region
      %20 = dma.done [#allocation3], 256
    $region9: #{tpu_custom_call.1} parent=1 // pred_fallthru
      _
    %v21 = vld [vmem:[#allocation2] sm:$0xff]
    %v22 = vld [vmem:[#allocation2 + $0x8] sm:$0xff]
    %v23 = vadd.f32 %v21, 0.5
    %v24 = vadd.f32 %v22, 0.5
    %25 = vst [vmem:[#allocation5] sm:$0xff] %v23
    %26 = vst [vmem:[#allocation5 + $0x8] sm:$0xff] %v24
    // Predicated region
    $region10: #{tpu_custom_call.1} parent=1 // pred_check
      _
    $region11: #{tpu_custom_call.1} parent=1 // pred_check_branch
      %28 = sbr.rel (0) target = $region13
    $region12: #{tpu_custom_call.1} parent=1 // pred_region
      %s30 = ssub.s32 256, 256
      %31 = vsyncadd [#allocation4], %s30
      %s33 = sshll.u32 [#allocation5], 4
      %s34 = int_to_ptr.vmem [resolvable:$true] %s33
      %36 = dma.vmem_to_hbm [thread:$0]  %s34, 256, %s1, [#allocation4]
    $region13: #{tpu_custom_call.1} parent=1 // pred_fallthru
      _
    // Predicated region
    $region14: #{tpu_custom_call.1} parent=1 // pred_check
      _
    $region15: #{tpu_custom_call.1} parent=1 // pred_check_branch
      %38 = sbr.rel (0) target = $region17
    $region16: #{tpu_custom_call.1} parent=1 // pred_region
      %39 = dma.done [#allocation4], 256
    $region17: #{tpu_custom_call.1} parent=1 // pred_fallthru
      _
    %40 = vsyncpa [#allocation3], 1
    %41 = vsyncpa [#allocation4], 1

</llo_original>
